<compile_context>
chip_gen: v7x
topology: tpu7x:2x2x1
jax: 0.10.0
libtpu: 0.0.40
codegen_flags: <defaults>
</compile_context>

<pallas_src>
import functools

import jax
import jax.numpy as jnp
from jax.experimental import pallas as pl
from jax.experimental.pallas import tpu as pltpu


# --------------------------- device-adaptive knobs --------------------------- #
def _tpu_generation():
    try:
        kind = jax.devices()[0].device_kind.lower()
    except Exception:
        return 0
    for g in (7, 6, 5, 4, 3, 2):
        if f"v{g}" in kind:
            return g
    return 0


def _stage2_config():
    """(row_tile_cap, col_tile_cap, vmem_limit_bytes) for the store-bound outer product."""
    gen = _tpu_generation()
    if gen >= 7:
        # 64 MiB VMEM/core, ~3.2 TB/s HBM: 8 MiB blocks double-buffered, leave scratch headroom.
        return 512, 4096, 48 * 1024 * 1024
    if gen >= 4:
        # v4/v5e/v6e: 128 MiB VMEM/core -> same 8 MiB blocks, larger scoped budget.
        return 512, 4096, 64 * 1024 * 1024
    # Old / unknown parts: stay well inside the default scoped VMEM.
    return 256, 1024, None


def _tile(dim, cap):
    # Full extent if it fits (always a legal block shape), otherwise the aligned cap with a
    # ragged last block handled by a pl.cdiv grid (Pallas masks the tail reads/writes).
    return dim if dim <= cap else cap


# --------------------------- stage 1: LSTM + heads --------------------------- #
def _head_kernel(scal_ref, gp_ref, h0_ref, c0_ref, mpu_ref,
                 wgp_ref, whh_ref, b_ref, wfu_ref,
                 h_ref, c_ref, fuab_ref):
    H = c0_ref.shape[1]

    # nn.LSTMCell gates (order i,f,g,o). Constant loss columns are pre-folded into b_ref,
    # so only grad_prep and h0 stream through HBM (no wrapper-side concat materialization).
    gates = (jnp.dot(gp_ref[...], wgp_ref[...], preferred_element_type=jnp.float32)
             + jnp.dot(h0_ref[...], whh_ref[...], preferred_element_type=jnp.float32)
             + b_ref[...])
    i_g = jax.nn.sigmoid(gates[:, 0:H])
    f_g = jax.nn.sigmoid(gates[:, H:2 * H])
    g_g = jnp.tanh(gates[:, 2 * H:3 * H])
    o_g = jax.nn.sigmoid(gates[:, 3 * H:4 * H])

    c_new = f_g * c0_ref[...] + i_g * g_g
    h_new = o_g * jnp.tanh(c_new)
    h_ref[...] = h_new
    c_ref[...] = c_new

    mem = mpu_ref[:, 0:1]                       # consolidated [mem | p_forget | p_update] slab
    pf = mpu_ref[:, 1:2]
    pu = mpu_ref[:, 2:3]
    # forget/update heads: one fused [H,2] matmul + rank-1 terms from SMEM scalars
    fu = jnp.dot(h_new, wfu_ref[...], preferred_element_type=jnp.float32)   # [tm, 2]
    ft = fu[:, 0:1] + mem * scal_ref[0] + pf * scal_ref[1] + scal_ref[2]
    ut = fu[:, 1:2] + mem * scal_ref[3] + pu * scal_ref[4] + scal_ref[5]
    a = jax.nn.sigmoid(ft) * mem                # rank-1 factor of new_c
    b = jax.nn.sigmoid(ut)
    fuab_ref[...] = jnp.concatenate([ft, ut, a, b], axis=1)                 # packed per-row store


# ------------------------ stage 2: n^2 outer product ------------------------- #
def _outer_kernel(col_tile, fuab_ref, grad_ref, out_ref):
    # new_c tile = a[i_block] - b[i_block] * grad[j_block]  (pure broadcast, store-bound).
    a = fuab_ref[:, 2:3]
    b = fuab_ref[:, 3:4]
    off = pl.multiple_of(pl.program_id(1) * col_tile, col_tile)
    g = grad_ref[:, pl.ds(off, col_tile)]       # grad row is resident in VMEM (one DMA total)
    out_ref[...] = (a - b * g).astype(out_ref.dtype)


# ------------------------------ JAX wrapper ---------------------------------- #
def meta_learner_forward(params, learner_loss, learner_grad_prep, learner_grad,
                         hidden_state=None, *, newc_dtype=jnp.float32,
                         s1_row_tile=None, s2_row_tile=None, s2_col_tile=None):
    f32 = jnp.float32
    n, gpc = learner_grad_prep.shape
    H = params["whh"].shape[1]
    In = params["wih"].shape[1]
    assert In == 2 * gpc, "LSTM input is [loss | grad_prep] with equal column widths"

    if hidden_state is None:
        h0 = jnp.zeros((n, H), f32)
        c0 = jnp.zeros((n, H), f32)
        pf = jnp.zeros((n, 1), f32)
        pu = jnp.zeros((n, 1), f32)
        mem = params["memory_cell"].astype(f32)
    else:
        (h0, c0), (pf, pu, mem) = hidden_state
        h0, c0 = h0.astype(f32), c0.astype(f32)
        pf, pu, mem = pf.astype(f32), pu.astype(f32), mem.astype(f32)

    # Fold the constant (row-broadcast) loss contribution into the fused LSTM bias:
    #   b_eff = b_ih + b_hh + loss_row @ Wih[:, :gpc]^T
    wih = params["wih"].astype(f32)
    loss_row = jnp.broadcast_to(learner_loss.astype(f32), (1, gpc))
    b_eff = ((params["b_ih"] + params["b_hh"]).reshape(1, 4 * H).astype(f32)
             + loss_row @ wih[:, :gpc].T)                                   # [1, 4H]
    w_gp = wih[:, gpc:].T                                                   # [gpc, 4H]
    whh_t = params["whh"].astype(f32).T                                     # [H, 4H]

    # fused forget/update coordinate weights + SMEM scalars (rank-1 / bias terms)
    wf = params["W_forget"].astype(f32)                                     # [H+2, 1]
    wu = params["W_update"].astype(f32)                                     # [H+2, 1]
    wfu = jnp.concatenate([wf[:H], wu[:H]], axis=1)                         # [H, 2]
    scalars = jnp.stack([wf[H, 0], wf[H + 1, 0], params["b_forget"][0, 0],
                         wu[H, 0], wu[H + 1, 0], params["b_update"][0, 0]]).astype(f32)
    mpu = jnp.concatenate([mem, pf, pu], axis=1)                            # one [n,3] slab
    gp = learner_grad_prep.astype(f32)

    # ---------------- stage 1: LSTM cell + heads (row-tiled, cdiv grid) ---------------- #
    tm1 = _tile(n, 2048 if s1_row_tile is None else s1_row_tile)
    row = lambda i: (i, 0)
    const = lambda i: (0, 0)

    h_new, c_new, fuab = pl.pallas_call(
        _head_kernel,
        grid=(pl.cdiv(n, tm1),),
        in_specs=[
            pl.BlockSpec(memory_space=pltpu.MemorySpace.SMEM),   # 6 head scalars
            pl.BlockSpec((tm1, gpc), row),                       # grad_prep rows
            pl.BlockSpec((tm1, H), row),                         # h0
            pl.BlockSpec((tm1, H), row),                         # c0
            pl.BlockSpec((tm1, 3), row),                         # [mem | p_forget | p_update]
            pl.BlockSpec((gpc, 4 * H), const),                   # Wih[:, gpc:]^T   (resident)
            pl.BlockSpec((H, 4 * H), const),                     # Whh^T            (resident)
            pl.BlockSpec((1, 4 * H), const),                     # fused bias + loss fold
            pl.BlockSpec((H, 2), const),                         # [Wf[:H] | Wu[:H]] (resident)
        ],
        out_specs=(
            pl.BlockSpec((tm1, H), row),                         # h_new
            pl.BlockSpec((tm1, H), row),                         # c_new
            pl.BlockSpec((tm1, 4), row),                         # packed [ft, ut, a, b]
        ),
        out_shape=(
            jax.ShapeDtypeStruct((n, H), f32),
            jax.ShapeDtypeStruct((n, H), f32),
            jax.ShapeDtypeStruct((n, 4), f32),
        ),
        compiler_params=pltpu.CompilerParams(dimension_semantics=("parallel",)),
        cost_estimate=pl.CostEstimate(
            flops=2 * n * (gpc + H) * 4 * H + 4 * n * H + 40 * n,
            transcendentals=n * (5 * H + 2),
            bytes_accessed=4 * (n * (gpc + 2 * H + 3) + (gpc + H + 1) * 4 * H + 2 * H + 6
                                + n * (2 * H + 4)),
        ),
    )(scalars, gp, h0, c0, mpu, w_gp, whh_t, b_eff, wfu)

    # ------------- stage 2: O(n^2) broadcast output, 2-D tiled, store-bound ------------- #
    rt_cap, ct_cap, vmem_limit = _stage2_config()
    tm2 = _tile(n, rt_cap if s2_row_tile is None else s2_row_tile)
    tn2 = _tile(n, ct_cap if s2_col_tile is None else s2_col_tile)
    nj = pl.cdiv(n, tn2)
    n_cols_pad = nj * tn2
    grad_row = learner_grad.reshape(1, n).astype(f32)
    if n_cols_pad != n:
        grad_row = jnp.pad(grad_row, ((0, 0), (0, n_cols_pad - n)))   # keep in-kernel pl.ds in bounds

    cparams = dict(dimension_semantics=("parallel", "parallel"))      # both axes split on v7x megacore
    if vmem_limit is not None:
        cparams["vmem_limit_bytes"] = vmem_limit
    out_itemsize = jnp.dtype(newc_dtype).itemsize

    newc = pl.pallas_call(
        functools.partial(_outer_kernel, tn2),
        grid=(pl.cdiv(n, tm2), nj),
        in_specs=[
            pl.BlockSpec((tm2, 4), lambda i, j: (i, 0)),              # a,b factors: i only (reused over j)
            pl.BlockSpec((1, n_cols_pad), lambda i, j: (0, 0)),       # grad row resident in VMEM
        ],
        # TODO(synk): pipeline_mode=pl.Buffered(3) on this out_spec is a v7x tuning sweep candidate.
        out_specs=pl.BlockSpec((tm2, tn2), lambda i, j: (i, j)),
        out_shape=jax.ShapeDtypeStruct((n, n), newc_dtype),
        compiler_params=pltpu.CompilerParams(**cparams),
        cost_estimate=pl.CostEstimate(
            flops=2 * n * n,
            transcendentals=0,
            bytes_accessed=out_itemsize * n * n + 4 * (n_cols_pad + 4 * n),
        ),
    )(fuab, grad_row)

    ft = fuab[:, 0:1]
    ut = fuab[:, 1:2]
    metalstm_out = jnp.squeeze(newc)
    # TODO(synk): newc is rank-1 structured (a - b * grad^T); if a consumer accepts the factored
    # form (a, b, grad), the dominant O(n^2) HBM materialization can be skipped entirely.
    return metalstm_out, [(h_new, c_new), [ft, ut, newc]]


# ----------------------- deterministic parameter init ---------------------- #
def init_params(key, input_size, hidden_size, n_learner_params):
    ks = jax.random.split(key, 9)
    k = 1.0 / float(hidden_size) ** 0.5

    def u(kk, shape, lo, hi):
        return jax.random.uniform(kk, shape, jnp.float32, lo, hi)

    return dict(
        # nn.LSTMCell default init: U(-1/sqrt(H), 1/sqrt(H))
        wih=u(ks[0], (4 * hidden_size, input_size), -k, k),
        whh=u(ks[1], (4 * hidden_size, hidden_size), -k, k),
        b_ih=u(ks[2], (4 * hidden_size,), -k, k),
        b_hh=u(ks[3], (4 * hidden_size,), -k, k),
        # MetaLearnerLSTMCell.init_params
        W_forget=u(ks[4], (hidden_size + 2, 1), -0.01, 0.01),
        W_update=u(ks[5], (hidden_size + 2, 1), -0.01, 0.01),
        memory_cell=u(ks[6], (n_learner_params, 1), -0.01, 0.01),
        b_forget=u(ks[7], (1, 1), 4.0, 6.0),
        b_update=u(ks[8], (1, 1), -5.0, -4.0),
    )


# ------------------------------ pure-JAX reference --------------------------- #
def reference_forward(params, learner_loss, learner_grad_prep, learner_grad, hidden_state=None):
    f32 = jnp.float32
    n = learner_grad_prep.shape[0]
    H = params["whh"].shape[1]
    x = jnp.concatenate(
        [jnp.broadcast_to(learner_loss, learner_grad_prep.shape), learner_grad_prep], axis=1
    ).astype(f32)
    if hidden_state is None:
        h0 = jnp.zeros((n, H), f32); c0 = jnp.zeros((n, H), f32)
        pf = jnp.zeros((n, 1), f32); pu = jnp.zeros((n, 1), f32)
        mem = params["memory_cell"].astype(f32)
    else:
        (h0, c0), (pf, pu, mem) = hidden_state
    gates = x @ params["wih"].T + h0 @ params["whh"].T + params["b_ih"] + params["b_hh"]
    i, f, g, o = jnp.split(gates, 4, axis=1)
    c = jax.nn.sigmoid(f) * c0 + jax.nn.sigmoid(i) * jnp.tanh(g)
    h = jax.nn.sigmoid(o) * jnp.tanh(c)
    zf = jnp.concatenate([h, mem, pf], axis=1)
    zu = jnp.concatenate([h, mem, pu], axis=1)
    ft = zf @ params["W_forget"] + params["b_forget"]
    ut = zu @ params["W_update"] + params["b_update"]
    new_c = jax.nn.sigmoid(ft) * mem - jax.nn.sigmoid(ut) * learner_grad  # [n,1]*[n] -> [n,n]
    return jnp.squeeze(new_c), (h, c, ft, ut)


if __name__ == "__main__":
    input_size, hidden_size, n_learner_params = 4, 32, 8

    key = jax.random.PRNGKey(0)
    kp, k1, k2, k3, k4 = jax.random.split(key, 5)
    params = init_params(kp, input_size, hidden_size, n_learner_params)

    learner_loss = jax.random.normal(k1, (1, 2), jnp.float32)
    learner_grad_prep = jax.random.normal(k2, (n_learner_params, 2), jnp.float32)
    learner_grad = jax.random.normal(k3, (n_learner_params,), jnp.float32)

    # Case 1: module-default path (no hidden state), small shapes.
    out, hidden = meta_learner_forward(params, learner_loss, learner_grad_prep, learner_grad)
    out = jax.block_until_ready(out)
    ref, _ = reference_forward(params, learner_loss, learner_grad_prep, learner_grad)
    assert out.shape == ref.shape, (out.shape, ref.shape)
    assert jnp.allclose(out, ref, atol=2e-5, rtol=2e-5), "case-1 kernel/reference mismatch"

    # Case 2: provided hidden state + n not divisible by the (forced small) tiles, exercising the
    # ragged-last-block masking path in both stages.
    n2 = 200
    params2 = init_params(kp, input_size, hidden_size, n2)
    ks = jax.random.split(k4, 8)
    loss2 = jax.random.normal(ks[0], (1, 2), jnp.float32)
    gp2 = jax.random.normal(ks[1], (n2, 2), jnp.float32)
    grad2 = jax.random.normal(ks[2], (n2,), jnp.float32)
    hs = ((0.1 * jax.random.normal(ks[3], (n2, hidden_size), jnp.float32),
           0.1 * jax.random.normal(ks[4], (n2, hidden_size), jnp.float32)),
          (jax.random.normal(ks[5], (n2, 1), jnp.float32),
           jax.random.normal(ks[6], (n2, 1), jnp.float32),
           0.01 * jax.random.normal(ks[7], (n2, 1), jnp.float32)))
    out2, _ = meta_learner_forward(params2, loss2, gp2, grad2, hidden_state=hs,
                                   s1_row_tile=64, s2_row_tile=64, s2_col_tile=128)
    out2 = jax.block_until_ready(out2)
    ref2, _ = reference_forward(params2, loss2, gp2, grad2, hidden_state=hs)
    assert out2.shape == ref2.shape, (out2.shape, ref2.shape)
    assert jnp.allclose(out2, ref2, atol=2e-5, rtol=2e-5), "case-2 kernel/reference mismatch"

    print("KERNEL_OK")
</pallas_src>

<mosaic_0001>
module attributes {stable_mosaic.version = 11 : i64} {
  func.func @_head_kernel(%arg0: i32, %arg1: memref<6xf32, #tpu.memory_space<smem>>, %arg2: memref<8x2xf32, #tpu.memory_space<vmem>>, %arg3: memref<8x32xf32, #tpu.memory_space<vmem>>, %arg4: memref<8x32xf32, #tpu.memory_space<vmem>>, %arg5: memref<8x3xf32, #tpu.memory_space<vmem>>, %arg6: memref<2x128xf32, #tpu.memory_space<vmem>>, %arg7: memref<32x128xf32, #tpu.memory_space<vmem>>, %arg8: memref<1x128xf32, #tpu.memory_space<vmem>>, %arg9: memref<32x2xf32, #tpu.memory_space<vmem>>, %arg10: memref<8x32xf32, #tpu.memory_space<vmem>>, %arg11: memref<8x32xf32, #tpu.memory_space<vmem>>, %arg12: memref<8x4xf32, #tpu.memory_space<vmem>>) attributes {dimension_semantics = [#tpu.dimension_semantics<parallel>], iteration_bounds = array<i64: 1>, scalar_prefetch = 0 : i64, scratch_operands = 0 : i64, tpu.core_type = #tpu.core_type<tc>, window_params = [{transform_indices = @transform_0, window_bounds = array<i64: 6>}, {transform_indices = @transform_1, window_bounds = array<i64: 8, 2>}, {transform_indices = @transform_2, window_bounds = array<i64: 8, 32>}, {transform_indices = @transform_3, window_bounds = array<i64: 8, 32>}, {transform_indices = @transform_4, window_bounds = array<i64: 8, 3>}, {pipeline_mode = #tpu.pipeline_mode<synchronous>, transform_indices = @transform_5, window_bounds = array<i64: 2, 128>}, {pipeline_mode = #tpu.pipeline_mode<synchronous>, transform_indices = @transform_6, window_bounds = array<i64: 32, 128>}, {pipeline_mode = #tpu.pipeline_mode<synchronous>, transform_indices = @transform_7, window_bounds = array<i64: 1, 128>}, {pipeline_mode = #tpu.pipeline_mode<synchronous>, transform_indices = @transform_8, window_bounds = array<i64: 32, 2>}, {transform_indices = @transform_9, window_bounds = array<i64: 8, 32>}, {transform_indices = @transform_10, window_bounds = array<i64: 8, 32>}, {transform_indices = @transform_11, window_bounds = array<i64: 8, 4>}]} {
    %c0 = arith.constant 0 : index
    %c0_0 = arith.constant 0 : index
    %0 = vector.load %arg2[%c0, %c0_0] : memref<8x2xf32, #tpu.memory_space<vmem>>, vector<8x2xf32>
    %c0_1 = arith.constant 0 : index
    %c0_2 = arith.constant 0 : index
    %1 = vector.load %arg6[%c0_1, %c0_2] : memref<2x128xf32, #tpu.memory_space<vmem>>, vector<2x128xf32>
    %cst = arith.constant dense<0.000000e+00> : vector<8x128xf32>
    %2 = tpu.matmul %0, %1, %cst {dimension_numbers = #tpu.dot_dimension_numbers<[1], [0], [0], [1], [0, 0, 1, 1], [], []>} : vector<8x2xf32>, vector<2x128xf32>, vector<8x128xf32> -> vector<8x128xf32>
    %c0_3 = arith.constant 0 : index
    %c0_4 = arith.constant 0 : index
    %3 = vector.load %arg3[%c0_3, %c0_4] : memref<8x32xf32, #tpu.memory_space<vmem>>, vector<8x32xf32>
    %c0_5 = arith.constant 0 : index
    %c0_6 = arith.constant 0 : index
    %4 = vector.load %arg7[%c0_5, %c0_6] : memref<32x128xf32, #tpu.memory_space<vmem>>, vector<32x128xf32>
    %cst_7 = arith.constant dense<0.000000e+00> : vector<8x128xf32>
    %5 = tpu.matmul %3, %4, %cst_7 {dimension_numbers = #tpu.dot_dimension_numbers<[1], [0], [0], [1], [0, 0, 1, 1], [], []>} : vector<8x32xf32>, vector<32x128xf32>, vector<8x128xf32> -> vector<8x128xf32>
    %6 = arith.addf %2, %5 : vector<8x128xf32>
    %c0_8 = arith.constant 0 : index
    %c0_9 = arith.constant 0 : index
    %7 = vector.load %arg8[%c0_8, %c0_9] : memref<1x128xf32, #tpu.memory_space<vmem>>, vector<1x128xf32>
    %8 = vector.broadcast %7 : vector<1x128xf32> to vector<8x128xf32>
    %9 = arith.addf %6, %8 : vector<8x128xf32>
    %10 = vector.extract_strided_slice %9 {offsets = [0, 0], sizes = [8, 32], strides = [1, 1]} : vector<8x128xf32> to vector<8x32xf32>
    %11 = arith.negf %10 : vector<8x32xf32>
    %12 = math.exp %11 : vector<8x32xf32>
    %cst_10 = arith.constant 1.000000e+00 : f32
    %13 = vector.broadcast %cst_10 : f32 to vector<8x32xf32>
    %14 = arith.addf %13, %12 : vector<8x32xf32>
    %15 = arith.divf %13, %14 : vector<8x32xf32>
    %16 = vector.extract_strided_slice %9 {offsets = [0, 32], sizes = [8, 32], strides = [1, 1]} : vector<8x128xf32> to vector<8x32xf32>
    %17 = arith.negf %16 : vector<8x32xf32>
    %18 = math.exp %17 : vector<8x32xf32>
    %cst_11 = arith.constant 1.000000e+00 : f32
    %19 = vector.broadcast %cst_11 : f32 to vector<8x32xf32>
    %20 = arith.addf %19, %18 : vector<8x32xf32>
    %21 = arith.divf %19, %20 : vector<8x32xf32>
    %22 = vector.extract_strided_slice %9 {offsets = [0, 64], sizes = [8, 32], strides = [1, 1]} : vector<8x128xf32> to vector<8x32xf32>
    %23 = math.tanh %22 : vector<8x32xf32>
    %24 = vector.extract_strided_slice %9 {offsets = [0, 96], sizes = [8, 32], strides = [1, 1]} : vector<8x128xf32> to vector<8x32xf32>
    %25 = arith.negf %24 : vector<8x32xf32>
    %26 = math.exp %25 : vector<8x32xf32>
    %cst_12 = arith.constant 1.000000e+00 : f32
    %27 = vector.broadcast %cst_12 : f32 to vector<8x32xf32>
    %28 = arith.addf %27, %26 : vector<8x32xf32>
    %29 = arith.divf %27, %28 : vector<8x32xf32>
    %c0_13 = arith.constant 0 : index
    %c0_14 = arith.constant 0 : index
    %30 = vector.load %arg4[%c0_13, %c0_14] : memref<8x32xf32, #tpu.memory_space<vmem>>, vector<8x32xf32>
    %31 = arith.mulf %21, %30 : vector<8x32xf32>
    %32 = arith.mulf %15, %23 : vector<8x32xf32>
    %33 = arith.addf %31, %32 : vector<8x32xf32>
    %34 = math.tanh %33 : vector<8x32xf32>
    %35 = arith.mulf %29, %34 : vector<8x32xf32>
    %c0_15 = arith.constant 0 : index
    %c0_16 = arith.constant 0 : index
    %36 = vector.load %arg10[%c0_15, %c0_16] : memref<8x32xf32, #tpu.memory_space<vmem>>, vector<8x32xf32>
    tpu.vector_store %arg10[%c0_15, %c0_16], %35 {strides = array<i32>} : memref<8x32xf32, #tpu.memory_space<vmem>>, vector<8x32xf32>,
    %c0_17 = arith.constant 0 : index
    %c0_18 = arith.constant 0 : index
    %37 = vector.load %arg11[%c0_17, %c0_18] : memref<8x32xf32, #tpu.memory_space<vmem>>, vector<8x32xf32>
    tpu.vector_store %arg11[%c0_17, %c0_18], %33 {strides = array<i32>} : memref<8x32xf32, #tpu.memory_space<vmem>>, vector<8x32xf32>,
    %c0_19 = arith.constant 0 : index
    %c0_20 = arith.constant 0 : index
    %38 = vector.load %arg5[%c0_19, %c0_20] : memref<8x3xf32, #tpu.memory_space<vmem>>, vector<8x1xf32>
    %c0_21 = arith.constant 0 : index
    %c1 = arith.constant 1 : index
    %39 = vector.load %arg5[%c0_21, %c1] : memref<8x3xf32, #tpu.memory_space<vmem>>, vector<8x1xf32>
    %c0_22 = arith.constant 0 : index
    %c2 = arith.constant 2 : index
    %40 = vector.load %arg5[%c0_22, %c2] : memref<8x3xf32, #tpu.memory_space<vmem>>, vector<8x1xf32>
    %c0_23 = arith.constant 0 : index
    %c0_24 = arith.constant 0 : index
    %41 = vector.load %arg9[%c0_23, %c0_24] : memref<32x2xf32, #tpu.memory_space<vmem>>, vector<32x2xf32>
    %cst_25 = arith.constant dense<0.000000e+00> : vector<8x2xf32>
    %42 = tpu.matmul %35, %41, %cst_25 {dimension_numbers = #tpu.dot_dimension_numbers<[1], [0], [0], [1], [0, 0, 1, 1], [], []>} : vector<8x32xf32>, vector<32x2xf32>, vector<8x2xf32> -> vector<8x2xf32>
    %43 = vector.extract_strided_slice %42 {offsets = [0, 0], sizes = [8, 1], strides = [1, 1]} : vector<8x2xf32> to vector<8x1xf32>
    %c0_26 = arith.constant 0 : index
    %44 = memref.load %arg1[%c0_26] : memref<6xf32, #tpu.memory_space<smem>>
    %45 = vector.broadcast %44 : f32 to vector<8x1xf32>
    %46 = arith.mulf %38, %45 : vector<8x1xf32>
    %47 = arith.addf %43, %46 : vector<8x1xf32>
    %c1_27 = arith.constant 1 : index
    %48 = memref.load %arg1[%c1_27] : memref<6xf32, #tpu.memory_space<smem>>
    %49 = vector.broadcast %48 : f32 to vector<8x1xf32>
    %50 = arith.mulf %39, %49 : vector<8x1xf32>
    %51 = arith.addf %47, %50 : vector<8x1xf32>
    %c2_28 = arith.constant 2 : index
    %52 = memref.load %arg1[%c2_28] : memref<6xf32, #tpu.memory_space<smem>>
    %53 = vector.broadcast %52 : f32 to vector<8x1xf32>
    %54 = arith.addf %51, %53 : vector<8x1xf32>
    %55 = vector.extract_strided_slice %42 {offsets = [0, 1], sizes = [8, 1], strides = [1, 1]} : vector<8x2xf32> to vector<8x1xf32>
    %c3 = arith.constant 3 : index
    %56 = memref.load %arg1[%c3] : memref<6xf32, #tpu.memory_space<smem>>
    %57 = vector.broadcast %56 : f32 to vector<8x1xf32>
    %58 = arith.mulf %38, %57 : vector<8x1xf32>
    %59 = arith.addf %55, %58 : vector<8x1xf32>
    %c4 = arith.constant 4 : index
    %60 = memref.load %arg1[%c4] : memref<6xf32, #tpu.memory_space<smem>>
    %61 = vector.broadcast %60 : f32 to vector<8x1xf32>
    %62 = arith.mulf %40, %61 : vector<8x1xf32>
    %63 = arith.addf %59, %62 : vector<8x1xf32>
    %c5 = arith.constant 5 : index
    %64 = memref.load %arg1[%c5] : memref<6xf32, #tpu.memory_space<smem>>
    %65 = vector.broadcast %64 : f32 to vector<8x1xf32>
    %66 = arith.addf %63, %65 : vector<8x1xf32>
    %67 = arith.negf %54 : vector<8x1xf32>
    %68 = math.exp %67 : vector<8x1xf32>
    %cst_29 = arith.constant 1.000000e+00 : f32
    %69 = vector.broadcast %cst_29 : f32 to vector<8x1xf32>
    %70 = arith.addf %69, %68 : vector<8x1xf32>
    %71 = arith.divf %69, %70 : vector<8x1xf32>
    %72 = arith.mulf %71, %38 : vector<8x1xf32>
    %73 = arith.negf %66 : vector<8x1xf32>
    %74 = math.exp %73 : vector<8x1xf32>
    %cst_30 = arith.constant 1.000000e+00 : f32
    %75 = vector.broadcast %cst_30 : f32 to vector<8x1xf32>
    %76 = arith.addf %75, %74 : vector<8x1xf32>
    %77 = arith.divf %75, %76 : vector<8x1xf32>
    %78 = tpu.concatenate %54, %66, %72, %77 in 1 : vector<8x1xf32>, vector<8x1xf32>, vector<8x1xf32>, vector<8x1xf32> -> vector<8x4xf32>
    %c0_31 = arith.constant 0 : index
    %c0_32 = arith.constant 0 : index
    %79 = vector.load %arg12[%c0_31, %c0_32] : memref<8x4xf32, #tpu.memory_space<vmem>>, vector<8x4xf32>
    tpu.vector_store %arg12[%c0_31, %c0_32], %78 {strides = array<i32>} : memref<8x4xf32, #tpu.memory_space<vmem>>, vector<8x4xf32>,
    return
  }
  func.func @transform_0(%arg0: i32) -> i32 {
    %c0_i32 = arith.constant 0 : i32
    %c0_i32_0 = arith.constant 0 : i32
    return %c0_i32 : i32
  }
  func.func @transform_1(%arg0: i32) -> (i32, i32) {
    %c0_i32 = arith.constant 0 : i32
    %c0_i32_0 = arith.constant 0 : i32
    return %arg0, %c0_i32 : i32, i32
  }
  func.func @transform_2(%arg0: i32) -> (i32, i32) {
    %c0_i32 = arith.constant 0 : i32
    %c0_i32_0 = arith.constant 0 : i32
    return %arg0, %c0_i32 : i32, i32
  }
  func.func @transform_3(%arg0: i32) -> (i32, i32) {
    %c0_i32 = arith.constant 0 : i32
    %c0_i32_0 = arith.constant 0 : i32
    return %arg0, %c0_i32 : i32, i32
  }
  func.func @transform_4(%arg0: i32) -> (i32, i32) {
    %c0_i32 = arith.constant 0 : i32
    %c0_i32_0 = arith.constant 0 : i32
    return %arg0, %c0_i32 : i32, i32
  }
  func.func @transform_5(%arg0: i32) -> (i32, i32) {
    %c0_i32 = arith.constant 0 : i32
    %c0_i32_0 = arith.constant 0 : i32
    %c0_i32_1 = arith.constant 0 : i32
    return %c0_i32, %c0_i32_0 : i32, i32
  }
  func.func @transform_6(%arg0: i32) -> (i32, i32) {
    %c0_i32 = arith.constant 0 : i32
    %c0_i32_0 = arith.constant 0 : i32
    %c0_i32_1 = arith.constant 0 : i32
    return %c0_i32, %c0_i32_0 : i32, i32
  }
  func.func @transform_7(%arg0: i32) -> (i32, i32) {
    %c0_i32 = arith.constant 0 : i32
    %c0_i32_0 = arith.constant 0 : i32
    %c0_i32_1 = arith.constant 0 : i32
    return %c0_i32, %c0_i32_0 : i32, i32
  }
  func.func @transform_8(%arg0: i32) -> (i32, i32) {
    %c0_i32 = arith.constant 0 : i32
    %c0_i32_0 = arith.constant 0 : i32
    %c0_i32_1 = arith.constant 0 : i32
    return %c0_i32, %c0_i32_0 : i32, i32
  }
  func.func @transform_9(%arg0: i32) -> (i32, i32) {
    %c0_i32 = arith.constant 0 : i32
    %c0_i32_0 = arith.constant 0 : i32
    return %arg0, %c0_i32 : i32, i32
  }
  func.func @transform_10(%arg0: i32) -> (i32, i32) {
    %c0_i32 = arith.constant 0 : i32
    %c0_i32_0 = arith.constant 0 : i32
    return %arg0, %c0_i32 : i32, i32
  }
  func.func @transform_11(%arg0: i32) -> (i32, i32) {
    %c0_i32 = arith.constant 0 : i32
    %c0_i32_0 = arith.constant 0 : i32
    return %arg0, %c0_i32 : i32, i32
  }
}

</mosaic_0001>

<llo_original>
// kernel: tpu_custom_call.1
$region0: #{tpu_custom_call.1}
  #allocation0 [shape = 'u32[]', space=smem, size = 0x4, offset = 0x4, fixed_abs, tag = 'smem constant byte address 0x4 - core index']
  #allocation1 [shape = 'u32[144,128]{1,0:T(1,128)}', space=vmem, size = 0x12000, scoped, tag = 'internal scratch']
  %s0 = inlined_call_operand.vmem [shape: f32[6], index: 0, kind: input, shape index: {}]
  %s1 = inlined_call_operand.vmem [shape: f32[8,2], index: 1, kind: input, shape index: {}]
  %s2 = inlined_call_operand.vmem [shape: f32[8,32], index: 2, kind: input, shape index: {}]
  %s3 = inlined_call_operand.vmem [shape: f32[8,32], index: 3, kind: input, shape index: {}]
  %s4 = inlined_call_operand.vmem [shape: f32[8,3], index: 4, kind: input, shape index: {}]
  %s5 = inlined_call_operand.vmem [shape: f32[2,128], index: 5, kind: input, shape index: {}]
  %s6 = inlined_call_operand.vmem [shape: f32[32,128], index: 6, kind: input, shape index: {}]
  %s7 = inlined_call_operand.vmem [shape: f32[1,128], index: 7, kind: input, shape index: {}]
  %s8 = inlined_call_operand.vmem [shape: f32[32,2], index: 8, kind: input, shape index: {}]
  %s9 = inlined_call_operand.hbm [shape: f32[8,32], index: 9, kind: output, shape index: {0}]
  %s10 = inlined_call_operand.hbm [shape: f32[8,32], index: 10, kind: output, shape index: {1}]
  %s11 = inlined_call_operand.vmem [shape: f32[8,4], index: 11, kind: output, shape index: {2}]
  %12 = xla_tuple %s9, %s10, %s11
  %s13 = sld [smem:[#allocation0]]
  $region66: #{tpu_custom_call.1} parent=0
    _
  %s15 = ssub.s32 1, %s13
  %s16 = scalar_select 0, %s15, %s13
  $region1: #{tpu_custom_call.1} parent=0
    #allocation2 [shape = 'u8[512]{0}', space=smem, size = 0x200, scoped, tag = 'input window, operand 0, single buffered']
    #allocation3 [shape = 's32[1]{0}', space=sflag, size = 0x4, scoped, tag = 'scoped memory for tpu_custom_call.1']
    #allocation4 [shape = 's32[1]{0}', space=sflag, size = 0x4, scoped, tag = 'scoped memory for tpu_custom_call.1']
    #allocation5 [shape = 'u8[4096]{0}', space=vmem, size = 0x1000, scoped, tag = 'output window, operand 0, single buffered']
    #allocation6 [shape = 'u8[4096]{0}', space=vmem, size = 0x1000, scoped, tag = 'output window, operand 1, single buffered']
    #allocation7 [shape = 's32[1]{0}', space=sflag, size = 0x4, scoped, tag = 'scoped memory for tpu_custom_call.1']
    %17 = vsyncpa [#allocation4], 0
    %18 = vsyncpa [#allocation3], 0
    %19 = vsyncpa [#allocation7], 0
    // Predicated region
    $region2: #{tpu_custom_call.1} parent=1 // pred_check
      _
    $region3: #{tpu_custom_call.1} parent=1 // pred_check_branch
      %21 = sbr.rel (0) target = $region5
    $region4: #{tpu_custom_call.1} parent=1 // pred_region
      %s23 = ssub.s32 16, 16
      %24 = vsyncadd [#allocation4], %s23
      %s26 = sshll.u32 %s0, 4
      %s27 = int_to_ptr.vmem [resolvable:$true] %s26
      %29 = dma.vmem_to_smem %s27, 16, [#allocation2], [#allocation4]
    $region5: #{tpu_custom_call.1} parent=1 // pred_fallthru
      _
    // Predicated region
    $region6: #{tpu_custom_call.1} parent=1 // pred_check
      _
    $region7: #{tpu_custom_call.1} parent=1 // pred_check_branch
      %31 = sbr.rel (0) target = $region9
    $region8: #{tpu_custom_call.1} parent=1 // pred_region
      _
    $region9: #{tpu_custom_call.1} parent=1 // pred_fallthru
      _
    // Predicated region
    $region10: #{tpu_custom_call.1} parent=1 // pred_check
      _
    $region11: #{tpu_custom_call.1} parent=1 // pred_check_branch
      %33 = sbr.rel (0) target = $region13
    $region12: #{tpu_custom_call.1} parent=1 // pred_region
      _
    $region13: #{tpu_custom_call.1} parent=1 // pred_fallthru
      _
    // Predicated region
    $region14: #{tpu_custom_call.1} parent=1 // pred_check
      _
    $region15: #{tpu_custom_call.1} parent=1 // pred_check_branch
      %35 = sbr.rel (0) target = $region17
    $region16: #{tpu_custom_call.1} parent=1 // pred_region
      _
    $region17: #{tpu_custom_call.1} parent=1 // pred_fallthru
      _
    // Predicated region
    $region18: #{tpu_custom_call.1} parent=1 // pred_check
      _
    $region19: #{tpu_custom_call.1} parent=1 // pred_check_branch
      %37 = sbr.rel (0) target = $region21
    $region20: #{tpu_custom_call.1} parent=1 // pred_region
      _
    $region21: #{tpu_custom_call.1} parent=1 // pred_fallthru
      _
    // Predicated region
    $region22: #{tpu_custom_call.1} parent=1 // pred_check
      _
    $region23: #{tpu_custom_call.1} parent=1 // pred_check_branch
      %39 = sbr.rel (0) target = $region25
    $region24: #{tpu_custom_call.1} parent=1 // pred_region
      _
    $region25: #{tpu_custom_call.1} parent=1 // pred_fallthru
      _
    // Predicated region
    $region26: #{tpu_custom_call.1} parent=1 // pred_check
      _
    $region27: #{tpu_custom_call.1} parent=1 // pred_check_branch
      %41 = sbr.rel (0) target = $region29
    $region28: #{tpu_custom_call.1} parent=1 // pred_region
      _
    $region29: #{tpu_custom_call.1} parent=1 // pred_fallthru
      _
    // Predicated region
    $region30: #{tpu_custom_call.1} parent=1 // pred_check
      _
    $region31: #{tpu_custom_call.1} parent=1 // pred_check_branch
      %43 = sbr.rel (0) target = $region33
    $region32: #{tpu_custom_call.1} parent=1 // pred_region
      _
    $region33: #{tpu_custom_call.1} parent=1 // pred_fallthru
      _
    // Predicated region
    $region34: #{tpu_custom_call.1} parent=1 // pred_check
      _
    $region35: #{tpu_custom_call.1} parent=1 // pred_check_branch
      %45 = sbr.rel (0) target = $region37
    $region36: #{tpu_custom_call.1} parent=1 // pred_region
      _
    $region37: #{tpu_custom_call.1} parent=1 // pred_fallthru
      _
    // Predicated region
    $region38: #{tpu_custom_call.1} parent=1 // pred_check
      _
    $region39: #{tpu_custom_call.1} parent=1 // pred_check_branch
      %47 = sbr.rel (0) target = $region41
    $region40: #{tpu_custom_call.1} parent=1 // pred_region
      %48 = dma.done [#allocation4], 16
    $region41: #{tpu_custom_call.1} parent=1 // pred_fallthru
      _
    %49 = sfence
    %v50 = vld [vmem:[%s1] sm:$0xff]
    %v51 = vld [vmem:[%s5] sm:$0x3]
    %v52 = vld [vmem:[%s2] sm:$0xff]
    %v53 = vld [vmem:[%s6] sm:$0xff]
    %v54 = vld [vmem:[%s6 + $0x8] sm:$0xff]
    %v55 = vld [vmem:[%s6 + $0x10] sm:$0xff]
    %v56 = vld [vmem:[%s6 + $0x18] sm:$0xff]
    %vm57 = vcmask 261120
    %v59 = vsel %vm57, %v52, 0
    %61 = vmatprep.subr.mxu0 0.0
    %62 = vmatpush1.msra.mxu0 %v53
    %63 = vmatprep.subr.mxu0 0.0
    %64 = vmatpush1.msra.mxu0 %v54
    %65 = vmatprep.subr.mxu0 0.0
    %66 = vmatpush1.msra.mxu0 %v55
    %67 = vmatprep.subr.mxu0 0.0
    %68 = vmatpush1.msra.mxu0 %v56
    %69 = vmatprep.subr.mxu0 0.0
    %70 = vmatpush1.msra.mxu0 0.0
    %71 = vmatprep.subr.mxu0 0.0
    %72 = vmatpush1.msra.mxu0 0.0
    %73 = vmatprep.subr.mxu0 0.0
    %74 = vmatpush1.msra.mxu0 0.0
    %75 = vmatprep.subr.mxu0 0.0
    %76 = vmatpush1.msra.mxu0 0.0
    %77 = vmatprep.subr.mxu0 0.0
    %78 = vmatpush1.msra.mxu0 0.0
    %79 = vmatprep.subr.mxu0 0.0
    %80 = vmatpush1.msra.mxu0 0.0
    %81 = vmatprep.subr.mxu0 0.0
    %82 = vmatpush1.msra.mxu0 0.0
    %83 = vmatprep.subr.mxu0 0.0
    %84 = vmatpush1.msra.mxu0 0.0
    %85 = vmatprep.subr.mxu0 0.0
    %86 = vmatpush1.msra.mxu0 0.0
    %87 = vmatprep.subr.mxu0 0.0
    %88 = vmatpush1.msra.mxu0 0.0
    %89 = vmatprep.subr.mxu0 0.0
    %90 = vmatpush1.msra.mxu0 0.0
    %91 = vmatprep.subr.mxu0 0.0
    %92 = vmatpush1.msra.mxu0 0.0
    %93 = vmatprep.subr.mxu0 0.0
    %94 = vmatpush1.msra.mxu0 0.0
    %95 = vmatprep.subr.mxu0 0.0
    %96 = vmatpush1.msra.mxu0 0.0
    %97 = vmatprep.subr.mxu0 0.0
    %98 = vmatpush1.msra.mxu0 0.0
    %99 = vmatprep.subr.mxu0 0.0
    %100 = vmatpush1.msra.mxu0 0.0
    %101 = vmatprep.subr.mxu0 0.0
    %102 = vmatpush1.msra.mxu0 0.0
    %103 = vmatprep.subr.mxu0 0.0
    %104 = vmatpush1.msra.mxu0 0.0
    %105 = vmatprep.subr.mxu0 0.0
    %106 = vmatpush1.msra.mxu0 0.0
    %107 = vmatprep.subr.mxu0 0.0
    %108 = vmatpush1.msra.mxu0 0.0
    %109 = vmatprep.subr.mxu0 0.0
    %110 = vmatpush1.msra.mxu0 0.0
    %111 = vmatprep.subr.mxu0 0.0
    %112 = vmatpush1.msra.mxu0 0.0
    %113 = vmatprep.subr.mxu0 0.0
    %114 = vmatpush1.msra.mxu0 0.0
    %115 = vmatprep.subr.mxu0 0.0
    %116 = vmatpush1.msra.mxu0 0.0
    %117 = vmatprep.subr.mxu0 0.0
    %118 = vmatpush1.msra.mxu0 0.0
    %119 = vmatprep.subr.mxu0 0.0
    %120 = vmatpush1.msra.mxu0 0.0
    %121 = vmatprep.subr.mxu0 0.0
    %122 = vmatpush1.msra.mxu0 0.0
    %123 = vmatprep.subr.mxu0 0.0
    %124 = vmatpush1.msra.mxu0 0.0
    %125 = vmatprep.mubr.f32.mxu0 0.0
    %126 = vmatmul.mubr.f32.gmra.mrb[0].mxu0 %v59
    %v127 = vpop.f32.mrb[0].mxu0
    %v128 = vadd.f32 0.0, %v127
    %v129 = vpop.f32.mrb[0].mxu0
    %130 = vdwg.mxu0
    %vm131 = vcmask 15360
    %v133 = vsel %vm131, %v50, 0
    %vm135 = vcmask 1041408
    %v137 = vsel %vm135, %v51, 0
    %139 = vmatprep.subr.mxu0 0.0
    %140 = vmatpush1.msra.mxu0 %v137
    %141 = vmatprep.subr.mxu0 0.0
    %142 = vmatpush1.msra.mxu0 0.0
    %143 = vmatprep.subr.mxu0 0.0
    %144 = vmatpush1.msra.mxu0 0.0
    %145 = vmatprep.subr.mxu0 0.0
    %146 = vmatpush1.msra.mxu0 0.0
    %147 = vmatprep.subr.mxu0 0.0
    %148 = vmatpush1.msra.mxu0 0.0
    %149 = vmatprep.subr.mxu0 0.0
    %150 = vmatpush1.msra.mxu0 0.0
    %151 = vmatprep.subr.mxu0 0.0
    %152 = vmatpush1.msra.mxu0 0.0
    %153 = vmatprep.subr.mxu0 0.0
    %154 = vmatpush1.msra.mxu0 0.0
    %155 = vmatprep.subr.mxu0 0.0
    %156 = vmatpush1.msra.mxu0 0.0
    %157 = vmatprep.subr.mxu0 0.0
    %158 = vmatpush1.msra.mxu0 0.0
    %159 = vmatprep.subr.mxu0 0.0
    %160 = vmatpush1.msra.mxu0 0.0
    %161 = vmatprep.subr.mxu0 0.0
    %162 = vmatpush1.msra.mxu0 0.0
    %163 = vmatprep.subr.mxu0 0.0
    %164 = vmatpush1.msra.mxu0 0.0
    %165 = vmatprep.subr.mxu0 0.0
    %166 = vmatpush1.msra.mxu0 0.0
    %167 = vmatprep.subr.mxu0 0.0
    %168 = vmatpush1.msra.mxu0 0.0
    %169 = vmatprep.subr.mxu0 0.0
    %170 = vmatpush1.msra.mxu0 0.0
    %171 = vmatprep.subr.mxu0 0.0
    %172 = vmatpush1.msra.mxu0 0.0
    %173 = vmatprep.subr.mxu0 0.0
    %174 = vmatpush1.msra.mxu0 0.0
    %175 = vmatprep.subr.mxu0 0.0
    %176 = vmatpush1.msra.mxu0 0.0
    %177 = vmatprep.subr.mxu0 0.0
    %178 = vmatpush1.msra.mxu0 0.0
    %179 = vmatprep.subr.mxu0 0.0
    %180 = vmatpush1.msra.mxu0 0.0
    %181 = vmatprep.subr.mxu0 0.0
    %182 = vmatpush1.msra.mxu0 0.0
    %183 = vmatprep.subr.mxu0 0.0
    %184 = vmatpush1.msra.mxu0 0.0
    %185 = vmatprep.subr.mxu0 0.0
    %186 = vmatpush1.msra.mxu0 0.0
    %187 = vmatprep.subr.mxu0 0.0
    %188 = vmatpush1.msra.mxu0 0.0
    %189 = vmatprep.subr.mxu0 0.0
    %190 = vmatpush1.msra.mxu0 0.0
    %191 = vmatprep.subr.mxu0 0.0
    %192 = vmatpush1.msra.mxu0 0.0
    %193 = vmatprep.subr.mxu0 0.0
    %194 = vmatpush1.msra.mxu0 0.0
    %195 = vmatprep.subr.mxu0 0.0
    %196 = vmatpush1.msra.mxu0 0.0
    %197 = vmatprep.subr.mxu0 0.0
    %198 = vmatpush1.msra.mxu0 0.0
    %199 = vmatprep.subr.mxu0 0.0
    %200 = vmatpush1.msra.mxu0 0.0
    %201 = vmatprep.subr.mxu0 0.0
    %202 = vmatpush1.msra.mxu0 0.0
    %203 = vmatprep.mubr.f32.mxu0 0.0
    %204 = vmatmul.mubr.f32.gmra.mrb[0].mxu0 %v133
    %v205 = vpop.f32.mrb[0].mxu0
    %v206 = vadd.f32 %v128, %v205
    %v207 = vpop.f32.mrb[0].mxu0
    %208 = vdwg.mxu0
    %v209 = vld [vmem:[%s7] sm:$0x1]
    %v211 = vlaneseq
    %v212 = vshrl.u32 %v211, 7
    %v213 = vsub.s32 0, %v212
    %v214 = vrot.slane %v209, %v213
    %v216 = vadd.f32 %v206, %v214
    %v217 = vxor.u32 %v216, 2147483648
    %v218 = vmul.f32 %v217, 1.442695
    %v219 = vpow.pop %v218
    %v220 = vadd.f32 %v219, 1.0
    %v221 = vrcp.pop %v220
    %v222 = vmul.f32 1.0, %v221
    %v223 = vtanh.pop %v216
    %v224 = vld [vmem:[%s3] sm:$0xff]
    %226 = vrot.lane.b32.xlu0 %v224, 32
    %v227 = vpop.permute.xlu0 %226
    %v229 = vmul.f32 %v222, %v227
    %231 = vrot.lane.b32.xlu0 %v223, 64
    %v232 = vpop.permute.xlu0 %231
    %v234 = vmul.f32 %v222, %v232
    %236 = vrot.lane.b32.xlu0 %v234, 32
    %v237 = vpop.permute.xlu0 %236
    %v239 = vadd.f32 %v229, %v237
    %v240 = vtanh.pop %v239
    %242 = vrot.lane.b32.xlu0 %v240, 64
    %v243 = vpop.permute.xlu0 %242
    %v245 = vmul.f32 %v222, %v243
    %247 = vrot.lane.b32.xlu0 %v245, 32
    %v248 = vpop.permute.xlu0 %247
    %250 = vst.msk [vmem:[#allocation5] sm:$0xff] %vm57, %v248
    %252 = vrot.lane.b32.xlu0 %v239, 96
    %v253 = vpop.permute.xlu0 %252
    %255 = vst.msk [vmem:[#allocation6] sm:$0xff] %vm57, %v253
    %v256 = vld [vmem:[%s4] sm:$0xff]
    %v257 = vld [vmem:[%s8] sm:$0xff]
    %v258 = vld [vmem:[%s8 + $0x8] sm:$0xff]
    %v259 = vld [vmem:[%s8 + $0x10] sm:$0xff]
    %v260 = vld [vmem:[%s8 + $0x18] sm:$0xff]
    %v261 = vsel %vm57, %v248, 0
    %263 = vmatprep.subr.mxu0 0.0
    %264 = vmatpush1.msra.mxu0 %v257
    %265 = vmatprep.subr.mxu0 0.0
    %266 = vmatpush1.msra.mxu0 %v258
    %267 = vmatprep.subr.mxu0 0.0
    %268 = vmatpush1.msra.mxu0 %v259
    %269 = vmatprep.subr.mxu0 0.0
    %270 = vmatpush1.msra.mxu0 %v260
    %271 = vmatprep.subr.mxu0 0.0
    %272 = vmatpush1.msra.mxu0 0.0
    %273 = vmatprep.subr.mxu0 0.0
    %274 = vmatpush1.msra.mxu0 0.0
    %275 = vmatprep.subr.mxu0 0.0
    %276 = vmatpush1.msra.mxu0 0.0
    %277 = vmatprep.subr.mxu0 0.0
    %278 = vmatpush1.msra.mxu0 0.0
    %279 = vmatprep.subr.mxu0 0.0
    %280 = vmatpush1.msra.mxu0 0.0
    %281 = vmatprep.subr.mxu0 0.0
    %282 = vmatpush1.msra.mxu0 0.0
    %283 = vmatprep.subr.mxu0 0.0
    %284 = vmatpush1.msra.mxu0 0.0
    %285 = vmatprep.subr.mxu0 0.0
    %286 = vmatpush1.msra.mxu0 0.0
    %287 = vmatprep.subr.mxu0 0.0
    %288 = vmatpush1.msra.mxu0 0.0
    %289 = vmatprep.subr.mxu0 0.0
    %290 = vmatpush1.msra.mxu0 0.0
    %291 = vmatprep.subr.mxu0 0.0
    %292 = vmatpush1.msra.mxu0 0.0
    %293 = vmatprep.subr.mxu0 0.0
    %294 = vmatpush1.msra.mxu0 0.0
    %295 = vmatprep.subr.mxu0 0.0
    %296 = vmatpush1.msra.mxu0 0.0
    %297 = vmatprep.subr.mxu0 0.0
    %298 = vmatpush1.msra.mxu0 0.0
    %299 = vmatprep.subr.mxu0 0.0
    %300 = vmatpush1.msra.mxu0 0.0
    %301 = vmatprep.subr.mxu0 0.0
    %302 = vmatpush1.msra.mxu0 0.0
    %303 = vmatprep.subr.mxu0 0.0
    %304 = vmatpush1.msra.mxu0 0.0
    %305 = vmatprep.subr.mxu0 0.0
    %306 = vmatpush1.msra.mxu0 0.0
    %307 = vmatprep.subr.mxu0 0.0
    %308 = vmatpush1.msra.mxu0 0.0
    %309 = vmatprep.subr.mxu0 0.0
    %310 = vmatpush1.msra.mxu0 0.0
    %311 = vmatprep.subr.mxu0 0.0
    %312 = vmatpush1.msra.mxu0 0.0
    %313 = vmatprep.subr.mxu0 0.0
    %314 = vmatpush1.msra.mxu0 0.0
    %315 = vmatprep.subr.mxu0 0.0
    %316 = vmatpush1.msra.mxu0 0.0
    %317 = vmatprep.subr.mxu0 0.0
    %318 = vmatpush1.msra.mxu0 0.0
    %319 = vmatprep.subr.mxu0 0.0
    %320 = vmatpush1.msra.mxu0 0.0
    %321 = vmatprep.subr.mxu0 0.0
    %322 = vmatpush1.msra.mxu0 0.0
    %323 = vmatprep.subr.mxu0 0.0
    %324 = vmatpush1.msra.mxu0 0.0
    %325 = vmatprep.subr.mxu0 0.0
    %326 = vmatpush1.msra.mxu0 0.0
    %327 = vmatprep.mubr.f32.mxu0 0.0
    %328 = vmatmul.mubr.f32.gmra.mrb[0].mxu0 %v261
    %v329 = vpop.f32.mrb[0].mxu0
    %v330 = vadd.f32 0.0, %v329
    %v331 = vpop.f32.mrb[0].mxu0
    %332 = vdwg.mxu0
    %s333 = sld [smem:[#allocation2]]
    %v334 = vstv %s333
    %v335 = vmul.f32 %v256, %v334
    %v336 = vadd.f32 %v330, %v335
    %s337 = sld [smem:[#allocation2 + $0x1]]
    %v338 = vstv %s337
    %v339 = vmul.f32 %v256, %v338
    %341 = vrot.lane.b32.xlu0 %v339, 127
    %v342 = vpop.permute.xlu0 %341
    %v344 = vadd.f32 %v336, %v342
    %s345 = sld [smem:[#allocation2 + $0x2]]
    %v346 = vstv %s345
    %v347 = vadd.f32 %v344, %v346
    %s348 = sld [smem:[#allocation2 + $0x3]]
    %v349 = vstv %s348
    %v350 = vmul.f32 %v256, %v349
    %352 = vrot.lane.b32.xlu0 %v350, 1
    %v353 = vpop.permute.xlu0 %352
    %v355 = vadd.f32 %v330, %v353
    %s356 = sld [smem:[#allocation2 + $0x4]]
    %v357 = vstv %s356
    %v358 = vmul.f32 %v256, %v357
    %360 = vrot.lane.b32.xlu0 %v358, 127
    %v361 = vpop.permute.xlu0 %360
    %v363 = vadd.f32 %v355, %v361
    %s364 = sld [smem:[#allocation2 + $0x5]]
    %v365 = vstv %s364
    %v366 = vadd.f32 %v363, %v365
    %v367 = vxor.u32 %v347, 2147483648
    %v368 = vmul.f32 %v367, 1.442695
    %v369 = vpow.pop %v368
    %v370 = vadd.f32 %v369, 1.0
    %v371 = vrcp.pop %v370
    %v372 = vmul.f32 1.0, %v371
    %v373 = vmul.f32 %v372, %v256
    %v374 = vxor.u32 %v366, 2147483648
    %v375 = vmul.f32 %v374, 1.442695
    %v376 = vpow.pop %v375
    %v377 = vadd.f32 %v376, 1.0
    %v378 = vrcp.pop %v377
    %v379 = vmul.f32 1.0, %v378
    %381 = vrot.lane.b32.xlu0 %v373, 2
    %v382 = vpop.permute.xlu0 %381
    %385 = vrot.lane.b32.xlu0 %v379, 2
    %v386 = vpop.permute.xlu0 %385
    %vm388 = vcmask 7168
    %v389 = vsel %vm388, %v347, %v366
    %v390 = vsel %vm131, %v389, %v382
    %vm391 = vcmask 23552
    %v392 = vsel %vm391, %v390, %v386
    %vm393 = vcmask 31744
    %394 = vst.msk [vmem:[%s11] sm:$0xff] %vm393, %v392
    // Predicated region
    $region42: #{tpu_custom_call.1} parent=1 // pred_check
      _
    $region43: #{tpu_custom_call.1} parent=1 // pred_check_branch
      %396 = sbr.rel (0) target = $region45
    $region44: #{tpu_custom_call.1} parent=1 // pred_region
      %s398 = ssub.s32 128, 128
      %399 = vsyncadd [#allocation3], %s398
      %s401 = sshll.u32 [#allocation5], 4
      %s402 = int_to_ptr.vmem [resolvable:$true] %s401
      %404 = dma.vmem_to_hbm [thread:$0]  %s402, 128, %s9, [#allocation3]
    $region45: #{tpu_custom_call.1} parent=1 // pred_fallthru
      _
    // Predicated region
    $region46: #{tpu_custom_call.1} parent=1 // pred_check
      _
    $region47: #{tpu_custom_call.1} parent=1 // pred_check_branch
      %406 = sbr.rel (0) target = $region49
    $region48: #{tpu_custom_call.1} parent=1 // pred_region
      %s408 = ssub.s32 128, 128
      %409 = vsyncadd [#allocation7], %s408
      %s411 = sshll.u32 [#allocation6], 4
      %s412 = int_to_ptr.vmem [resolvable:$true] %s411
      %414 = dma.vmem_to_hbm [thread:$0]  %s412, 128, %s10, [#allocation7]
    $region49: #{tpu_custom_call.1} parent=1 // pred_fallthru
      _
    // Predicated region
    $region50: #{tpu_custom_call.1} parent=1 // pred_check
      _
    $region51: #{tpu_custom_call.1} parent=1 // pred_check_branch
      %416 = sbr.rel (0) target = $region53
    $region52: #{tpu_custom_call.1} parent=1 // pred_region
      _
    $region53: #{tpu_custom_call.1} parent=1 // pred_fallthru
      _
    // Predicated region
    $region54: #{tpu_custom_call.1} parent=1 // pred_check
      _
    $region55: #{tpu_custom_call.1} parent=1 // pred_check_branch
      %418 = sbr.rel (0) target = $region57
    $region56: #{tpu_custom_call.1} parent=1 // pred_region
      %419 = dma.done [#allocation3], 128
    $region57: #{tpu_custom_call.1} parent=1 // pred_fallthru
      _
    // Predicated region
    $region58: #{tpu_custom_call.1} parent=1 // pred_check
      _
    $region59: #{tpu_custom_call.1} parent=1 // pred_check_branch
      %421 = sbr.rel (0) target = $region61
    $region60: #{tpu_custom_call.1} parent=1 // pred_region
      %422 = dma.done [#allocation7], 128
    $region61: #{tpu_custom_call.1} parent=1 // pred_fallthru
      _
    // Predicated region
    $region62: #{tpu_custom_call.1} parent=1 // pred_check
      _
    $region63: #{tpu_custom_call.1} parent=1 // pred_check_branch
      %424 = sbr.rel (0) target = $region65
    $region64: #{tpu_custom_call.1} parent=1 // pred_region
      _
    $region65: #{tpu_custom_call.1} parent=1 // pred_fallthru
      _
    %425 = vsyncpa [#allocation3], 1
    %426 = vsyncpa [#allocation7], 1
    %427 = vsyncpa [#allocation4], 1

</llo_original>
